<compile_context>
chip_gen: v5e
topology: v5e:2x2
jax: 0.10.0
libtpu: 0.0.40
codegen_flags: <defaults>
</compile_context>

<pallas_src>
import numpy as np
import jax
import jax.numpy as jnp
from jax import lax
from jax.experimental import pallas as pl
from jax.experimental.pallas import tpu as pltpu

_LANE = 128          # TPU lane width: keep output slabs lane-dense
_NEG_BIG = -1e30     # bias for padded logit lanes (exp() underflows to exactly 0)
_COS_EPS = 1e-12     # guards the cosine norm (norms >> eps for this data)


# --------------------------------------------------------------------------- #
# Kernels
# --------------------------------------------------------------------------- #
def _prep_kernel(x_ref, w_ref, xw_ref, xn_ref):
    """Per row tile: xw = x @ W (bf16, feeds the aggregation matmul) and
    xn = L2-row-normalized x (bf16, feeds the cosine-score matmul)."""
    x = x_ref[...]
    xw = jnp.dot(x.astype(jnp.bfloat16), w_ref[...],
                 preferred_element_type=jnp.float32)
    xw_ref[...] = xw.astype(jnp.bfloat16)
    inv_nrm = lax.rsqrt(jnp.maximum(jnp.sum(x * x, axis=1, keepdims=True),
                                    _COS_EPS))
    xn_ref[...] = (x * inv_nrm).astype(jnp.bfloat16)


def _attention_aggregate(xn_ref, xnt_ref, adj_ref, xw_ref, b_ref, threshold):
    """RGATConv message + aggregate for one tile of destination rows."""
    f32 = jnp.float32
    # cosine similarities vs ALL nodes: one well-shaped MXU matmul (xn^T pre-transposed).
    cos = jnp.dot(xn_ref[...], xnt_ref[...], preferred_element_type=f32)
    a = jnp.where(cos < threshold, 1e-6, cos)             # RGATConv threshold clamp
    a = a * adj_ref[...].astype(f32)                      # 0/1 edge mask (self loops on diag)
    s = jnp.sum(a, axis=1, keepdims=True)                  # softmax(log a) == a / sum(a)
    u = jnp.dot(a.astype(jnp.bfloat16), xw_ref[...],       # only O(N^2*HC) matmul, bf16 MXU
                preferred_element_type=f32)
    # Normalize AFTER aggregation; kept exact (approx=False) so the parity check
    # against the reference stays tight.
    h = u * pl.reciprocal(s, approx=False) + b_ref[...]
    # TODO(synk): attention dropout (att_dropout) is eval-mode only; no Bernoulli mask.
    return h


def _make_mid_layer_kernel(threshold):
    def kernel(xn_ref, xnt_ref, adj_ref, xw_ref, b_ref, g_ref, bt_ref, o_ref):
        h = _attention_aggregate(xn_ref, xnt_ref, adj_ref, xw_ref, b_ref, threshold)
        mu = jnp.mean(h, axis=1, keepdims=True)             # LayerNorm (eps=1e-5)
        c = h - mu
        var = jnp.mean(c * c, axis=1, keepdims=True)
        hn = c * lax.rsqrt(var + 1e-5) * g_ref[...] + bt_ref[...]
        o_ref[...] = jnp.maximum(hn, 0.0)                   # ReLU
        # TODO(synk): feature dropout after ReLU is eval-mode only (no-op).
    return kernel


def _make_last_layer_kernel(threshold):
    def kernel(xn_ref, xnt_ref, adj_ref, xw_ref, b_ref, o_ref):
        h = _attention_aggregate(xn_ref, xnt_ref, adj_ref, xw_ref, b_ref, threshold)
        m = jnp.max(h, axis=1, keepdims=True)                # log_softmax (padded lanes
        z = h - m                                            # carry a -1e30 bias -> exp == 0)
        lse = jnp.log(jnp.sum(jnp.exp(z), axis=1, keepdims=True))
        o_ref[...] = z - lse
    return kernel


# --------------------------------------------------------------------------- #
# Per-layer wrapper
# --------------------------------------------------------------------------- #
def _rgat_layer_call(h, adj_bf16, w_bf16, bias, ln_g, ln_b, *,
                     threshold, tile_m, last):
    n, f_in = h.shape
    hc = w_bf16.shape[1]
    assert n % tile_m == 0, "pad N to a multiple of tile_m"
    ntiles = n // tile_m
    cparams = pltpu.CompilerParams(
        dimension_semantics=("parallel",),          # row tiles are independent (megacore)
        vmem_limit_bytes=32 * 1024 * 1024)

    # 1) prep: xw (bf16) and L2-normalized features (bf16), row-tiled.
    xw, xn = pl.pallas_call(
        _prep_kernel,
        grid=(ntiles,),
        in_specs=[pl.BlockSpec((tile_m, f_in), lambda i: (i, 0)),
                  pl.BlockSpec((f_in, hc), lambda i: (0, 0))],
        out_specs=(pl.BlockSpec((tile_m, hc), lambda i: (i, 0)),
                   pl.BlockSpec((tile_m, f_in), lambda i: (i, 0))),
        out_shape=(jax.ShapeDtypeStruct((n, hc), jnp.bfloat16),
                   jax.ShapeDtypeStruct((n, f_in), jnp.bfloat16)),
        compiler_params=cparams,
    )(h, w_bf16)

    xnt = jnp.transpose(xn)   # (f_in, n): layout plumbing, once per layer, outside the kernel

    if last:
        kernel = _make_last_layer_kernel(threshold)
        extra_specs, extra_args = [], ()
    else:
        kernel = _make_mid_layer_kernel(threshold)
        extra_specs = [pl.BlockSpec((1, hc), lambda i: (0, 0)),
                       pl.BlockSpec((1, hc), lambda i: (0, 0))]
        extra_args = (ln_g, ln_b)

    # 2) attention + aggregation + (LN/ReLU | log_softmax), row-tiled over destinations.
    return pl.pallas_call(
        kernel,
        grid=(ntiles,),
        in_specs=[pl.BlockSpec((tile_m, f_in), lambda i: (i, 0)),   # xn tile
                  pl.BlockSpec((f_in, n), lambda i: (0, 0)),        # xn^T   (resident)
                  pl.BlockSpec((tile_m, n), lambda i: (i, 0)),      # adjacency tile (bf16)
                  pl.BlockSpec((n, hc), lambda i: (0, 0)),          # xw     (resident, bf16)
                  pl.BlockSpec((1, hc), lambda i: (0, 0))]          # conv bias
                 + extra_specs,                                     # LN gamma / beta
        out_specs=pl.BlockSpec((tile_m, hc), lambda i: (i, 0)),     # lane-dense output rows
        out_shape=jax.ShapeDtypeStruct((n, hc), jnp.float32),
        compiler_params=cparams,
    )(xn, xnt, adj_bf16, xw, bias, *extra_args)


# --------------------------------------------------------------------------- #
# Model forward + parameters
# --------------------------------------------------------------------------- #
def rgat_forward(x, adj, layers, *, threshold=0.1, tile_m=32):
    """RGAT forward (eval): [conv -> LN -> ReLU] * (L-1) -> conv -> log_softmax.
    TODO(synk): layer_norm_first / return_attention_weights / att_cpu paths and the
    raw-feature-dim > 500 cosine branch of RGATConv.message are not implemented."""
    adj_bf16 = adj.astype(jnp.bfloat16)   # 0/1 mask is exact in bf16; halves O(N^2) bytes
    nclass = layers[-1]["nclass"]
    h = x
    num = len(layers)
    for idx, layer in enumerate(layers):
        last = idx == num - 1
        h = _rgat_layer_call(h, adj_bf16, layer["w_bf16"], layer["b_kernel"],
                             layer.get("ln_g"), layer.get("ln_b"),
                             threshold=threshold, tile_m=tile_m, last=last)
    return h[:, :nclass]                   # drop logit lane padding


def init_params(key, *, in_channels, hidden_channels, out_channels, num_layers, heads=1):
    """Parameters mimicking RGAT: per conv a GATConv linear (no bias) + additive bias;
    LayerNorm(gamma, beta) after every conv except the last.  With `heads` heads of
    hidden_channels // heads channels (concat=True) the linear is simply
    (f_in, hidden_channels); the RGATConv attention is shared across heads."""
    assert hidden_channels % heads == 0
    layers = []
    keys = jax.random.split(key, 4 * num_layers)
    f_in = in_channels
    for l in range(num_layers):
        last = l == num_layers - 1
        width = out_channels if last else hidden_channels
        k_w, k_b, k_g, k_bt = keys[4 * l:4 * l + 4]
        w = jax.random.normal(k_w, (f_in, width), jnp.float32) * 0.1
        b = jax.random.normal(k_b, (1, width), jnp.float32) * 0.1
        layer = dict(w=w, b=b, nclass=width)
        if last:
            # lane-pad the classifier to a 128-wide slab; padded logits get a -1e30 bias
            # so they vanish under log_softmax and are sliced off in the wrapper.
            pad = ((width + _LANE - 1) // _LANE) * _LANE
            w_pad = jnp.zeros((f_in, pad), jnp.float32).at[:, :width].set(w)
            b_pad = jnp.full((1, pad), _NEG_BIG, jnp.float32).at[:, :width].set(b)
            layer["w_bf16"] = w_pad.astype(jnp.bfloat16)
            layer["b_kernel"] = b_pad
        else:
            layer["w_bf16"] = w.astype(jnp.bfloat16)
            layer["b_kernel"] = b
            layer["ln_g"] = 1.0 + 0.1 * jax.random.normal(k_g, (1, width), jnp.float32)
            layer["ln_b"] = 0.1 * jax.random.normal(k_bt, (1, width), jnp.float32)
        layers.append(layer)
        f_in = width
    return layers


def reference_forward(x, adj, layers, *, threshold):
    """Pure-JAX/XLA reference with the same dense-graph semantics and the same
    bf16-operand / f32-accumulation policy as the kernels."""
    f32, bf16 = jnp.float32, jnp.bfloat16
    h = x
    num = len(layers)
    for idx, layer in enumerate(layers):
        last = idx == num - 1
        xw = jnp.dot(h.astype(bf16), layer["w"].astype(bf16),
                     preferred_element_type=f32).astype(bf16)
        inv_nrm = lax.rsqrt(jnp.maximum(jnp.sum(h * h, axis=1, keepdims=True), _COS_EPS))
        xn = (h * inv_nrm).astype(bf16)
        cos = jnp.dot(xn, xn.T, preferred_element_type=f32)
        a = jnp.where(cos < threshold, 1e-6, cos) * adj
        s = jnp.sum(a, axis=1, keepdims=True)
        u = jnp.dot(a.astype(bf16), xw, preferred_element_type=f32)
        out = u / s + layer["b"]
        if last:
            h = jax.nn.log_softmax(out, axis=-1)
        else:
            mu = out.mean(axis=1, keepdims=True)
            c = out - mu
            var = (c * c).mean(axis=1, keepdims=True)
            h = jax.nn.relu(c * lax.rsqrt(var + 1e-5) * layer["ln_g"] + layer["ln_b"])
    return h


if __name__ == "__main__":
    # Small, TPU-friendly shapes: 64 nodes, 32 input feats, hidden 128 (4 heads x 32),
    # 8 classes, 3 RGATConv layers, 2 row tiles of 32.
    n_nodes, in_channels, hidden_channels, out_channels = 64, 32, 128, 8
    num_layers, heads, threshold, tile_m = 3, 4, 0.1, 32

    key = jax.random.PRNGKey(0)
    k_x, k_g, k_p = jax.random.split(key, 3)
    x = jax.random.normal(k_x, (n_nodes, in_channels), jnp.float32)

    # Random directed graph: adj[i, j] = 1 iff edge j -> i, plus self loops
    # (RGATConv does remove_self_loops + add_self_loops).
    adj = (jax.random.uniform(k_g, (n_nodes, n_nodes)) < 0.15).astype(jnp.float32)
    adj = jnp.maximum(adj, jnp.eye(n_nodes, dtype=jnp.float32))

    layers = init_params(k_p, in_channels=in_channels, hidden_channels=hidden_channels,
                         out_channels=out_channels, num_layers=num_layers, heads=heads)

    out = rgat_forward(x, adj, layers, threshold=threshold, tile_m=tile_m)
    out = jax.block_until_ready(out)
    assert out.shape == (n_nodes, out_channels)

    ref = reference_forward(x, adj, layers, threshold=threshold)
    if not np.allclose(np.asarray(out), np.asarray(ref), atol=5e-2, rtol=5e-2):
        max_err = float(np.max(np.abs(np.asarray(out) - np.asarray(ref))))
        raise AssertionError(
            f"Pallas kernel output mismatch vs JAX reference (max abs err {max_err:.3e})")
    print("KERNEL_OK")
</pallas_src>

<mosaic_0001>
module attributes {stable_mosaic.version = 11 : i64} {
  func.func @_prep_kernel(%arg0: i32, %arg1: memref<32x32xf32, #tpu.memory_space<vmem>>, %arg2: memref<32x128xbf16, #tpu.memory_space<vmem>>, %arg3: memref<32x128xbf16, #tpu.memory_space<vmem>>, %arg4: memref<32x32xbf16, #tpu.memory_space<vmem>>) attributes {dimension_semantics = [#tpu.dimension_semantics<parallel>], iteration_bounds = array<i64: 2>, scalar_prefetch = 0 : i64, scratch_operands = 0 : i64, tpu.core_type = #tpu.core_type<tc>, window_params = [{transform_indices = @transform_0, window_bounds = array<i64: 32, 32>}, {pipeline_mode = #tpu.pipeline_mode<synchronous>, transform_indices = @transform_1, window_bounds = array<i64: 32, 128>}, {transform_indices = @transform_2, window_bounds = array<i64: 32, 128>}, {transform_indices = @transform_3, window_bounds = array<i64: 32, 32>}]} {
    %c0 = arith.constant 0 : index
    %c0_0 = arith.constant 0 : index
    %0 = vector.load %arg1[%c0, %c0_0] : memref<32x32xf32, #tpu.memory_space<vmem>>, vector<32x32xf32>
    %1 = arith.truncf %0 : vector<32x32xf32> to vector<32x32xbf16>
    %c0_1 = arith.constant 0 : index
    %c0_2 = arith.constant 0 : index
    %2 = vector.load %arg2[%c0_1, %c0_2] : memref<32x128xbf16, #tpu.memory_space<vmem>>, vector<32x128xbf16>
    %cst = arith.constant dense<0.000000e+00> : vector<32x128xf32>
    %3 = tpu.matmul %1, %2, %cst {dimension_numbers = #tpu.dot_dimension_numbers<[1], [0], [0], [1], [0, 0, 1, 1], [], []>} : vector<32x32xbf16>, vector<32x128xbf16>, vector<32x128xf32> -> vector<32x128xf32>
    %4 = arith.truncf %3 : vector<32x128xf32> to vector<32x128xbf16>
    %c0_3 = arith.constant 0 : index
    %c0_4 = arith.constant 0 : index
    %5 = vector.load %arg3[%c0_3, %c0_4] : memref<32x128xbf16, #tpu.memory_space<vmem>>, vector<32x128xbf16>
    tpu.vector_store %arg3[%c0_3, %c0_4], %4 {strides = array<i32>} : memref<32x128xbf16, #tpu.memory_space<vmem>>, vector<32x128xbf16>,
    %6 = arith.mulf %0, %0 : vector<32x32xf32>
    %cst_5 = arith.constant dense<0.000000e+00> : vector<32xf32>
    %7 = vector.multi_reduction <add>, %6, %cst_5 [1] : vector<32x32xf32> to vector<32xf32>
    %8 = vector.shape_cast %7 : vector<32xf32> to vector<32x1xf32>
    %cst_6 = arith.constant 9.99999996E-13 : f32
    %9 = vector.broadcast %cst_6 : f32 to vector<32x1xf32>
    %10 = arith.maximumf %8, %9 : vector<32x1xf32>
    %11 = math.rsqrt %10 : vector<32x1xf32>
    %12 = vector.broadcast %11 : vector<32x1xf32> to vector<32x32xf32>
    %13 = arith.mulf %0, %12 : vector<32x32xf32>
    %14 = arith.truncf %13 : vector<32x32xf32> to vector<32x32xbf16>
    %c0_7 = arith.constant 0 : index
    %c0_8 = arith.constant 0 : index
    %15 = vector.load %arg4[%c0_7, %c0_8] : memref<32x32xbf16, #tpu.memory_space<vmem>>, vector<32x32xbf16>
    tpu.vector_store %arg4[%c0_7, %c0_8], %14 {strides = array<i32>} : memref<32x32xbf16, #tpu.memory_space<vmem>>, vector<32x32xbf16>,
    return
  }
  func.func @transform_0(%arg0: i32) -> (i32, i32) {
    %c0_i32 = arith.constant 0 : i32
    %c0_i32_0 = arith.constant 0 : i32
    return %arg0, %c0_i32 : i32, i32
  }
  func.func @transform_1(%arg0: i32) -> (i32, i32) {
    %c0_i32 = arith.constant 0 : i32
    %c0_i32_0 = arith.constant 0 : i32
    %c0_i32_1 = arith.constant 0 : i32
    return %c0_i32, %c0_i32_0 : i32, i32
  }
  func.func @transform_2(%arg0: i32) -> (i32, i32) {
    %c0_i32 = arith.constant 0 : i32
    %c0_i32_0 = arith.constant 0 : i32
    return %arg0, %c0_i32 : i32, i32
  }
  func.func @transform_3(%arg0: i32) -> (i32, i32) {
    %c0_i32 = arith.constant 0 : i32
    %c0_i32_0 = arith.constant 0 : i32
    return %arg0, %c0_i32 : i32, i32
  }
}

</mosaic_0001>

<llo_original>
// kernel: tpu_custom_call.1
$region0: #{tpu_custom_call.1}
  #allocation0 [shape = 'u32[]', space=smem, size = 0x4, offset = 0x4, fixed_abs, tag = 'smem constant byte address 0x4 - core index']
  #allocation1 [shape = 'u32[72,128]{1,0:T(1,128)}', space=vmem, size = 0x9000, scoped, tag = 'internal scratch']
  %s0 = inlined_call_operand.vmem [shape: f32[64,32], index: 0, kind: input, shape index: {}]
  %s1 = inlined_call_operand.vmem [shape: bf16[32,128], index: 1, kind: input, shape index: {}]
  %s2 = inlined_call_operand.hbm [shape: bf16[64,128], index: 2, kind: output, shape index: {0}]
  %s3 = inlined_call_operand.vmem [shape: bf16[64,32], index: 3, kind: output, shape index: {1}]
  %4 = xla_tuple %s2, %s3
  %s5 = sld [smem:[#allocation0]]
  $region49: #{tpu_custom_call.1} parent=0
    _
  %s7 = ssub.s32 1, %s5
  %s8 = scalar_select 0, %s7, %s5
  $region1: #{tpu_custom_call.1} parent=0
    #allocation2 [shape = 'u8[16384]{0}', space=vmem, size = 0x4000, scoped, tag = 'output window, operand 0']
    #allocation3 [shape = 's32[2]{0}', space=sflag, size = 0x8, scoped, tag = 'scoped memory for tpu_custom_call.1']
    %9 = vsyncpa [#allocation3], 0
    %s10 = scalar_lea.sflag [#allocation3], 1
    %11 = vsyncpa %s10, 0
    loop: start=0, step=1, limit=4
    $region2: #{tpu_custom_call.1} parent=1 // loop_pre_header
      _
    $region3: #{tpu_custom_call.1} parent=1 // loop_header
      %s13 = sphi 0, %s17
      %p14 = scmp.ge.s32.totalorder %s13, 4
      %s23 = sphi 0, %s25
      %s26 = sphi 0, %s23
      %s27 = sphi 0, %s26
      %s43 = sphi 0, %s27
      %s47 = sphi 0, %s47
      %s49 = sphi 0, %s47
      %s50 = sphi 0, %s49
      %s64 = sphi 0, %s50
      %s70 = sphi 0, %s72
      %s73 = sphi 0, %s70
      %s74 = sphi 0, %s73
      %s90 = sphi 0, %s74
      %s96 = sphi 0, %s98
      %s99 = sphi 0, %s96
      %s100 = sphi 0, %s99
      %s116 = sphi 0, %s100
    $region4: #{tpu_custom_call.1} parent=1 // loop_header_branch
      %16 = sbr.rel (%p14) target = $region8
    $region5: #{tpu_custom_call.1} parent=1 // loop_body
      %s18 = ssub.s32 %s13, 1
      %s19 = ssub.s32 %s13, 2
      %s20 = sadd.s32 %s13, 1
      %s21 = ssub.s32 %s13, %s20
      %p22 = scmp.eq.s32.totalorder %s21, 0
      %s24 = sadd.s32 %s23, 1
      %s25 = scalar_select %p22, %s23, %s24
      %p28 = pneg %p22
      %p29 = scmp.eq.s32.totalorder %s13, 1
      %p30 = por %p28, %p29
      %p31 = scmp.ne.s32.totalorder %s23, %s26
      %p32 = scmp.eq.s32.totalorder %s13, 0
      %p33 = por %p31, %p32
      %p34 = scmp.ne.s32.totalorder %s23, %s26
      %p35 = scmp.eq.s32.totalorder %s18, 1
      %p36 = por %p34, %p35
      %p37 = scmp.ne.s32.totalorder %s26, %s27
      %p38 = scmp.eq.s32.totalorder %s18, 0
      %p39 = por %p37, %p38
      %p40 = scmp.ne.s32.totalorder %s26, %s27
      %p41 = scmp.eq.s32.totalorder %s19, 1
      %p42 = por %p40, %p41
      %p44 = scmp.ne.s32.totalorder %s27, %s43
      %p45 = scmp.eq.s32.totalorder %s19, 0
      %p46 = por %p44, %p45
      %s48 = sadd.s32 %s47, 1
      %p51 = scmp.eq.s32.totalorder %s13, 1
      %p52 = scmp.ne.s32.totalorder %s47, %s49
      %p53 = scmp.eq.s32.totalorder %s13, 0
      %p54 = por %p52, %p53
      %p55 = scmp.ne.s32.totalorder %s47, %s49
      %p56 = scmp.eq.s32.totalorder %s18, 1
      %p57 = por %p55, %p56
      %p58 = scmp.ne.s32.totalorder %s49, %s50
      %p59 = scmp.eq.s32.totalorder %s18, 0
      %p60 = por %p58, %p59
      %p61 = scmp.ne.s32.totalorder %s49, %s50
      %p62 = scmp.eq.s32.totalorder %s19, 1
      %p63 = por %p61, %p62
      %p65 = scmp.ne.s32.totalorder %s50, %s64
      %p66 = scmp.eq.s32.totalorder %s19, 0
      %p67 = por %p65, %p66
      %s68 = ssub.s32 %s13, %s20
      %p69 = scmp.eq.s32.totalorder %s68, 0
      %s71 = sadd.s32 %s70, 1
      %s72 = scalar_select %p69, %s70, %s71
      %p75 = pneg %p69
      %p76 = scmp.eq.s32.totalorder %s13, 1
      %p77 = por %p75, %p76
      %p78 = scmp.ne.s32.totalorder %s70, %s73
      %p79 = scmp.eq.s32.totalorder %s13, 0
      %p80 = por %p78, %p79
      %p81 = scmp.ne.s32.totalorder %s70, %s73
      %p82 = scmp.eq.s32.totalorder %s18, 1
      %p83 = por %p81, %p82
      %p84 = scmp.ne.s32.totalorder %s73, %s74
      %p85 = scmp.eq.s32.totalorder %s18, 0
      %p86 = por %p84, %p85
      %p87 = scmp.ne.s32.totalorder %s73, %s74
      %p88 = scmp.eq.s32.totalorder %s19, 1
      %p89 = por %p87, %p88
      %p91 = scmp.ne.s32.totalorder %s74, %s90
      %p92 = scmp.eq.s32.totalorder %s19, 0
      %p93 = por %p91, %p92
      %s94 = ssub.s32 %s13, %s20
      %p95 = scmp.eq.s32.totalorder %s94, 0
      %s97 = sadd.s32 %s96, 1
      %s98 = scalar_select %p95, %s96, %s97
      %p101 = pneg %p95
      %p102 = scmp.eq.s32.totalorder %s13, 1
      %p103 = por %p101, %p102
      %p104 = scmp.ne.s32.totalorder %s96, %s99
      %p105 = scmp.eq.s32.totalorder %s13, 0
      %p106 = por %p104, %p105
      %p107 = scmp.ne.s32.totalorder %s96, %s99
      %p108 = scmp.eq.s32.totalorder %s18, 1
      %p109 = por %p107, %p108
      %p110 = scmp.ne.s32.totalorder %s99, %s100
      %p111 = scmp.eq.s32.totalorder %s18, 0
      %p112 = por %p110, %p111
      %p113 = scmp.ne.s32.totalorder %s99, %s100
      %p114 = scmp.eq.s32.totalorder %s19, 1
      %p115 = por %p113, %p114
      %p117 = scmp.ne.s32.totalorder %s100, %s116
      %p118 = scmp.eq.s32.totalorder %s19, 0
      %p119 = por %p117, %p118
      %p120 = scmp.le.s32.totalorder 1, %s13
      %p121 = scmp.lt.s32.totalorder %s13, 3
      %p122 = pnand %p120, %p121
      %p123 = pneg %p122
      // Predicated region
      $region9: #{tpu_custom_call.1} parent=5 // pred_check
        _
      $region10: #{tpu_custom_call.1} parent=5 // pred_check_branch
        %125 = sbr.rel (%p122) target = $region12
      $region11: #{tpu_custom_call.1} parent=5 // pred_region
        %s126 = ssub.s32 %s13, 1
        // Predicated region
        $region13: #{tpu_custom_call.1} parent=11 // pred_check
          %p127 = pneg %p60
        $region14: #{tpu_custom_call.1} parent=11 // pred_check_branch
          %129 = sbr.rel (%p127) target = $region16
        $region15: #{tpu_custom_call.1} parent=11 // pred_region
          _
        $region16: #{tpu_custom_call.1} parent=11 // pred_fallthru
          _
      $region12: #{tpu_custom_call.1} parent=5 // pred_fallthru
        _
      %p130 = scmp.lt.s32.totalorder %s13, 2
      // Predicated region
      $region17: #{tpu_custom_call.1} parent=5 // pred_check
        %p131 = pneg %p130
      $region18: #{tpu_custom_call.1} parent=5 // pred_check_branch
        %133 = sbr.rel (%p131) target = $region20
      $region19: #{tpu_custom_call.1} parent=5 // pred_region
        // Predicated region
        $region21: #{tpu_custom_call.1} parent=19 // pred_check
          %p134 = pneg %p33
        $region22: #{tpu_custom_call.1} parent=19 // pred_check_branch
          %136 = sbr.rel (%p134) target = $region24
        $region23: #{tpu_custom_call.1} parent=19 // pred_region
          %s137 = smul.u32 4, %s13
          %p138 = scmp.lt.s32.totalorder %s137, 7
          %s139 = scalar_select %p138, %s137, 7
          %s140 = smul.addr %s139, 8
          %s141 = scalar_lea.vmem %s0, %s140
          %s142 = smul.u32 4, %s13
        $region24: #{tpu_custom_call.1} parent=19 // pred_fallthru
          _
      $region20: #{tpu_custom_call.1} parent=5 // pred_fallthru
        _
      %p143 = scmp.le.s32.totalorder 1, %s13
      %p144 = scmp.lt.s32.totalorder %s13, 3
      %p145 = pnand %p143, %p144
      %p146 = pneg %p145
      // Predicated region
      $region25: #{tpu_custom_call.1} parent=5 // pred_check
        _
      $region26: #{tpu_custom_call.1} parent=5 // pred_check_branch
        %148 = sbr.rel (%p145) target = $region28
      $region27: #{tpu_custom_call.1} parent=5 // pred_region
        %s149 = ssub.s32 %s13, 1
        %s150 = smul.u32 4, %s18
        %p151 = scmp.lt.s32.totalorder %s150, 7
        %s152 = scalar_select %p151, %s150, 7
        %s153 = smul.addr %s152, 8
        %s154 = scalar_lea.vmem %s0, %s153
        %p155 = pneg %p39
        %p156 = pneg %p36
        %p157 = pneg %p60
        %p158 = pneg %p57
        %p159 = pneg %p86
        %p160 = pneg %p83
        %s161 = sand.u32 %s73, 1
        %s162 = scalar_lea.sflag [#allocation3], %s161
        %s163 = sand.u32 %s73, 1
        %s164 = smul.addr %s163, 16
        %s165 = scalar_lea.vmem [#allocation2], %s164
        %p166 = pneg %p112
        %p167 = pneg %p109
        %s168 = smul.u32 4, %s18
        %p169 = scmp.lt.s32.totalorder %s168, 7
        %s170 = scalar_select %p169, %s168, 7
        %s171 = smul.addr %s170, 4
        %s172 = scalar_lea.vmem %s3, %s171
        %s173 = smul.u32 4, %s18
        %p174 = scmp.lt.s32.totalorder %s173, 7
        %s175 = scalar_select %p174, %s173, 7
        %s176 = smul.addr %s175, 8
        %s177 = scalar_lea.vmem %s0, %s176
        %s178 = smul.u32 4, %s18
        %s179 = smul.u32 4, %s18
        %s180 = smul.u32 4, %s18
        %p181 = scmp.lt.s32.totalorder %s180, 7
        %s182 = scalar_select %p181, %s180, 7
        %s183 = smul.addr %s182, 4
        %s184 = scalar_lea.vmem %s3, %s183
        %s185 = smul.u32 4, %s18
        %v187 = vld [vmem:[%s177] sm:$0xff]
        %v188 = vld [vmem:[%s177 + $0x8] sm:$0xff]
        %v189 = vld [vmem:[%s177 + $0x10] sm:$0xff]
        %v190 = vld [vmem:[%s177 + $0x18] sm:$0xff]
        %v191 = vpack.c.bf16 %v188, %v187
        %v192 = vpack.c.bf16 %v190, %v189
        %v193 = vld [vmem:[%s1] sm:$0xf]
        %v194 = vld [vmem:[%s1 + $0x4] sm:$0xf]
        %v195 = vld [vmem:[%s1 + $0x8] sm:$0xf]
        %v196 = vld [vmem:[%s1 + $0xc] sm:$0xf]
        %v201 = vunpack.c.l.b16 %v193
        %v202 = vunpack.c.l.b16 %v194
        %v203 = vunpack.c.l.b16 %v195
        %v204 = vunpack.c.l.b16 %v196
        %v205 = vpack.c.b16 %v202, %v201
        %v206 = vpack.c.b16 %v204, %v203
        %vm209 = vcmask 261120
        %v211 = vsel %vm209, %v191, 0
        %v214 = vsel %vm209, %v192, 0
        %216 = vmatpush.bf16.msra.mxu0 0
        %217 = vmatpush.bf16.msra.mxu0 0
        %218 = vmatpush.bf16.msra.mxu0 0
        %219 = vmatpush.bf16.msra.mxu0 0
        %220 = vmatpush.bf16.msra.mxu0 0
        %221 = vmatpush.bf16.msra.mxu0 0
        %222 = vmatpush.bf16.msra.mxu0 %v206
        %223 = vmatpush.bf16.msra.mxu0 %v205
        %224 = vmatmul.bf16.gmra.mxu0 %v211
        %v225 = vpop.f32.mrf.mxu0
        %v226 = vadd.f32 0.0, %v225
        %v227 = vpop.f32.mrf.mxu0
        %v228 = vadd.f32 0.0, %v227
        %229 = vmatmul.bf16.gmra.mxu0 %v214
        %v230 = vpop.f32.mrf.mxu0
        %v231 = vadd.f32 0.0, %v230
        %v232 = vpop.f32.mrf.mxu0
        %v233 = vadd.f32 0.0, %v232
        %234 = vdwg.mxu0
        %v235 = vpack.c.bf16 %v226, %v226
        %v236 = vpack.c.bf16 %v228, %v228
        %v237 = vpack.c.bf16 %v231, %v231
        %v238 = vpack.c.bf16 %v233, %v233
        %239 = vst [vmem:[%s165] sm:$0xf] %v235
        %240 = vst [vmem:[%s165 + $0x4] sm:$0xf] %v236
        %241 = vst [vmem:[%s165 + $0x8] sm:$0xf] %v237
        %242 = vst [vmem:[%s165 + $0xc] sm:$0xf] %v238
        %v243 = vmul.f32 %v187, %v187
        %v244 = vmul.f32 %v188, %v188
        %v245 = vmul.f32 %v189, %v189
        %v246 = vmul.f32 %v190, %v190
        %v247 = vsel %vm209, %v243, 0.0
        %248 = vadd.xlane.f32.xlu0 %v247
        %v249 = vpop.xlane.xlu0 %248
        %v250 = vsel %vm209, %v244, 0.0
        %251 = vadd.xlane.f32.xlu0 %v250
        %v252 = vpop.xlane.xlu0 %251
        %v253 = vsel %vm209, %v245, 0.0
        %254 = vadd.xlane.f32.xlu0 %v253
        %v255 = vpop.xlane.xlu0 %254
        %v256 = vsel %vm209, %v246, 0.0
        %257 = vadd.xlane.f32.xlu0 %v256
        %v258 = vpop.xlane.xlu0 %257
        %v259 = vmax.f32 %v249, 1e-12
        %v260 = vmax.f32 %v252, 1e-12
        %v261 = vmax.f32 %v255, 1e-12
        %v262 = vmax.f32 %v258, 1e-12
        %v263 = vrsqrt.pop %v259
        %v264 = vmul.f32 %v263, %v259
        %v265 = vmul.f32 %v264, %v263
        %v266 = vmul.f32 0.5, %v265
        %v267 = vsub.f32 1.5, %v266
        %v268 = vmul.f32 %v263, %v267
        %vm269 = vweird.f32 %v259
        %vm270 = vweird.f32 %v263
        %vm271 = vmor %vm269, %vm270
        %v272 = vsel %vm271, %v263, %v268
        %v273 = vrsqrt.pop %v260
        %v274 = vmul.f32 %v273, %v260
        %v275 = vmul.f32 %v274, %v273
        %v276 = vmul.f32 0.5, %v275
        %v277 = vsub.f32 1.5, %v276
        %v278 = vmul.f32 %v273, %v277
        %vm279 = vweird.f32 %v260
        %vm280 = vweird.f32 %v273
        %vm281 = vmor %vm279, %vm280
        %v282 = vsel %vm281, %v273, %v278
        %v283 = vrsqrt.pop %v261
        %v284 = vmul.f32 %v283, %v261
        %v285 = vmul.f32 %v284, %v283
        %v286 = vmul.f32 0.5, %v285
        %v287 = vsub.f32 1.5, %v286
        %v288 = vmul.f32 %v283, %v287
        %vm289 = vweird.f32 %v261
        %vm290 = vweird.f32 %v283
        %vm291 = vmor %vm289, %vm290
        %v292 = vsel %vm291, %v283, %v288
        %v293 = vrsqrt.pop %v262
        %v294 = vmul.f32 %v293, %v262
        %v295 = vmul.f32 %v294, %v293
        %v296 = vmul.f32 0.5, %v295
        %v297 = vsub.f32 1.5, %v296
        %v298 = vmul.f32 %v293, %v297
        %vm299 = vweird.f32 %v262
        %vm300 = vweird.f32 %v293
        %vm301 = vmor %vm299, %vm300
        %v302 = vsel %vm301, %v293, %v298
        %v303 = vmul.f32 %v187, %v272
        %v304 = vmul.f32 %v188, %v282
        %v305 = vmul.f32 %v189, %v292
        %v306 = vmul.f32 %v190, %v302
        %v307 = vpack.c.bf16 %v303, %v303
        %v308 = vpack.c.bf16 %v304, %v304
        %v309 = vpack.c.bf16 %v305, %v305
        %v310 = vpack.c.bf16 %v306, %v306
        %vm311 = vcmask 257024
        %312 = vst.msk [vmem:[%s184] sm:$0xf] %vm311, %v307
        %313 = vst.msk [vmem:[%s184 + $0x4] sm:$0xf] %vm311, %v308
        %314 = vst.msk [vmem:[%s184 + $0x8] sm:$0xf] %vm311, %v309
        %315 = vst.msk [vmem:[%s184 + $0xc] sm:$0xf] %vm311, %v310
        %s316 = sand.u32 %s73, 1
        %s317 = scalar_lea.sflag [#allocation3], %s316
        %s318 = sand.u32 %s73, 1
        %s319 = smul.addr %s318, 16
        %s320 = scalar_lea.vmem [#allocation2], %s319
        %s321 = smul.u32 4, %s18
        %p322 = scmp.lt.s32.totalorder %s321, 7
        %s323 = scalar_select %p322, %s321, 7
        %s324 = smul.addr %s323, 4
        %s325 = scalar_lea.vmem %s3, %s324
        // Predicated region
        $region29: #{tpu_custom_call.1} parent=27 // pred_check
          %p326 = pneg %p83
        $region30: #{tpu_custom_call.1} parent=27 // pred_check_branch
          %328 = sbr.rel (%p326) target = $region32
        $region31: #{tpu_custom_call.1} parent=27 // pred_region
          %s329 = smul.u32 4, %s18
          %331 = vsyncadd %s317, 0
          %s332 = smul.addr %s329, 4
          %s333 = scalar_lea.hbm %s2, %s332
          %s334 = sshll.u32 %s320, 4
          %s335 = int_to_ptr.vmem [resolvable:$true] %s334
          %s336 = sshll.u32 %s333, 4
          %s337 = int_to_ptr.hbm [resolvable:$true] %s336
          %342 = dma.vmem_to_hbm [thread:$0]  %s335, 256, %s337, %s317, 64, 64, 4
        $region32: #{tpu_custom_call.1} parent=27 // pred_fallthru
          _
        // Predicated region
        $region33: #{tpu_custom_call.1} parent=27 // pred_check
          %p343 = pneg %p109
        $region34: #{tpu_custom_call.1} parent=27 // pred_check_branch
          %345 = sbr.rel (%p343) target = $region36
        $region35: #{tpu_custom_call.1} parent=27 // pred_region
          %s346 = smul.u32 4, %s18
        $region36: #{tpu_custom_call.1} parent=27 // pred_fallthru
          _
      $region28: #{tpu_custom_call.1} parent=5 // pred_fallthru
        _
      %p347 = scmp.le.s32.totalorder 2, %s13
      // Predicated region
      $region37: #{tpu_custom_call.1} parent=5 // pred_check
        %p348 = pneg %p347
      $region38: #{tpu_custom_call.1} parent=5 // pred_check_branch
        %350 = sbr.rel (%p348) target = $region40
      $region39: #{tpu_custom_call.1} parent=5 // pred_region
        %s351 = ssub.s32 %s13, 2
        // Predicated region
        $region41: #{tpu_custom_call.1} parent=39 // pred_check
          %p352 = pneg %p89
        $region42: #{tpu_custom_call.1} parent=39 // pred_check_branch
          %354 = sbr.rel (%p352) target = $region44
        $region43: #{tpu_custom_call.1} parent=39 // pred_region
          %s355 = sand.u32 %s74, 1
          %s356 = scalar_lea.sflag [#allocation3], %s355
          %s357 = sand.u32 %s74, 1
          %s358 = smul.addr %s357, 16
          %s359 = scalar_lea.vmem [#allocation2], %s358
          %361 = dma.done %s356, 256
        $region44: #{tpu_custom_call.1} parent=39 // pred_fallthru
          _
        // Predicated region
        $region45: #{tpu_custom_call.1} parent=39 // pred_check
          %p362 = pneg %p115
        $region46: #{tpu_custom_call.1} parent=39 // pred_check_branch
          %364 = sbr.rel (%p362) target = $region48
        $region47: #{tpu_custom_call.1} parent=39 // pred_region
          %s365 = smul.u32 4, %s19
          %p366 = scmp.lt.s32.totalorder %s365, 7
          %s367 = scalar_select %p366, %s365, 7
          %s368 = smul.addr %s367, 4
          %s369 = scalar_lea.vmem %s3, %s368
        $region48: #{tpu_custom_call.1} parent=39 // pred_fallthru
          _
      $region40: #{tpu_custom_call.1} parent=5 // pred_fallthru
        _
    $region6: #{tpu_custom_call.1} parent=1 // loop_footer
      %s17 = sadd.s32 1, %s13
    $region7: #{tpu_custom_call.1} parent=1 // loop_footer_branch
      %12 = sbr.rel target = $region3
    $region8: #{tpu_custom_call.1} parent=1 // loop_exit
      _
    %370 = vsyncpa [#allocation3], 1
    %s371 = scalar_lea.sflag [#allocation3], 1
    %372 = vsyncpa %s371, 1

</llo_original>
